<compile_context>
chip_gen: v6e
topology: v6e:2x2x1
jax: 0.10.0
libtpu: 0.0.40
codegen_flags: <defaults>
</compile_context>

<pallas_src>
import functools
import math

import jax
import jax.numpy as jnp
from jax.experimental import pallas as pl
from jax.experimental.pallas import tpu as pltpu

EPS = 1e-5


def _round_up(n, m):
    return ((n + m - 1) // m) * m


def _chip_vmem_bytes():
    """Trace-time hardware query; fall back to the smallest tier (v7x, 64 MiB)."""
    try:
        info = pltpu.get_tpu_info()
        cap = getattr(info, "vmem_capacity_bytes", None)
        if cap:
            return int(cap)
    except Exception:
        pass
    return 64 * 1024 * 1024


_CHIP_VMEM = _chip_vmem_bytes()
if _CHIP_VMEM >= 100 * 1024 * 1024:        # v5e / v6e: 128 MiB physical VMEM
    _VMEM_LIMIT = 64 * 1024 * 1024
    _LN_TILE_BUDGET = 20 * 1024 * 1024
    _LN_ROW_CAP = 1024
    _GEMM_TM, _GEMM_TN, _GEMM_TK = 512, 1024, 512
else:                                       # v7x: 64 MiB physical VMEM
    _VMEM_LIMIT = 32 * 1024 * 1024
    _LN_TILE_BUDGET = 10 * 1024 * 1024
    _LN_ROW_CAP = 512
    _GEMM_TM, _GEMM_TN, _GEMM_TK = 256, 512, 512


# ----------------------------------------------------------------------------
# LayerNorm (bias-free, matching nn.LayerNorm(n_embd, bias=False), eps=1e-5)
# ----------------------------------------------------------------------------
def _ln_kernel(x_ref, w_ref, ln_ref):
    y = x_ref[...].astype(jnp.float32)
    w = w_ref[...].astype(jnp.float32)
    d = y.shape[-1]
    mean = jnp.sum(y, axis=-1, keepdims=True) * (1.0 / d)
    c = y - mean
    var = jnp.sum(c * c, axis=-1, keepdims=True) * (1.0 / d)   # two-pass, f32
    inv = jax.lax.rsqrt(var + EPS)
    ln_ref[...] = (c * inv * w).astype(ln_ref.dtype)


def layer_norm(x, weight, *, out_dtype=jnp.bfloat16, row_tile=None):
    rows, d = x.shape
    w2 = weight.reshape(1, d).astype(jnp.float32)
    per_row = 2 * d * (x.dtype.itemsize + jnp.dtype(out_dtype).itemsize)
    rt = row_tile or max(8, min(_LN_ROW_CAP, (_LN_TILE_BUDGET // per_row) // 8 * 8))
    rt = max(8, min(rt, _round_up(rows, 8)))
    return pl.pallas_call(
        _ln_kernel,
        out_shape=jax.ShapeDtypeStruct((rows, d), out_dtype),
        grid_spec=pltpu.PrefetchScalarGridSpec(
            num_scalar_prefetch=0,
            grid=(pl.cdiv(rows, rt),),
            in_specs=[
                pl.BlockSpec((rt, d), lambda i: (i, 0)),
                pl.BlockSpec((1, d), lambda i: (0, 0)),
            ],
            out_specs=pl.BlockSpec((rt, d), lambda i: (i, 0)),
        ),
        compiler_params=pltpu.CompilerParams(
            dimension_semantics=("parallel",),
            vmem_limit_bytes=_VMEM_LIMIT,
        ),
    )(x, w2)


# ----------------------------------------------------------------------------
# Tiled bf16 matmul with fused epilogue: optional bias, GELU, residual add.
# ----------------------------------------------------------------------------
def _matmul_kernel(*refs, has_bias, has_res, activation):
    it = iter(refs)
    a_ref = next(it)
    b_ref = next(it)
    bias_ref = next(it) if has_bias else None
    res_ref = next(it) if has_res else None
    o_ref = next(it)
    acc_ref = next(it)

    @pl.when(pl.program_id(2) == 0)
    def _():
        acc_ref[...] = jnp.zeros_like(acc_ref)

    acc_ref[...] += jnp.dot(a_ref[...], b_ref[...],
                            preferred_element_type=jnp.float32)

    @pl.when(pl.program_id(2) == pl.num_programs(2) - 1)
    def _():
        out = acc_ref[...]
        if has_bias:
            out = out + bias_ref[...].astype(jnp.float32)
        if activation == "gelu":
            # TODO(synk): PyTorch nn.GELU() is the exact-erf form; the fused
            # epilogue uses the tanh approximation (guaranteed Mosaic lowering).
            out = jax.nn.gelu(out, approximate=True)
        if has_res:
            out = out + res_ref[...].astype(jnp.float32)
        o_ref[...] = out.astype(o_ref.dtype)


def matmul(a, b, bias=None, residual=None, activation=None, *,
           out_dtype=jnp.bfloat16, tm=None, tn=None, tk=None):
    """out = activation(a @ b + bias) + residual; bf16 MXU, f32 accumulate."""
    a = a.astype(jnp.bfloat16)
    b = b.astype(jnp.bfloat16)
    M, K = a.shape
    K2, N = b.shape
    assert K == K2
    tm = min(tm or _GEMM_TM, _round_up(M, 8))
    tn = min(tn or _GEMM_TN, _round_up(N, 128))     # ragged-N tail stays masked
    tk = tk or _GEMM_TK
    if K % 128 != 0:
        tk = K                       # single exact K block (no ragged reduction)
    else:
        tk = min(tk, K)
        while K % tk != 0:           # keep K tiling exact so the acc stays correct
            tk -= 128

    in_specs = [
        pl.BlockSpec((tm, tk), lambda i, j, k: (i, k)),
        pl.BlockSpec((tk, tn), lambda i, j, k: (k, j)),
    ]
    operands = [a, b]
    if bias is not None:
        in_specs.append(pl.BlockSpec((1, tn), lambda i, j, k: (0, j)))
        operands.append(bias.reshape(1, N).astype(jnp.float32))
    if residual is not None:
        assert residual.shape == (M, N)
        in_specs.append(pl.BlockSpec((tm, tn), lambda i, j, k: (i, j)))
        operands.append(residual)

    kernel = functools.partial(_matmul_kernel, has_bias=bias is not None,
                               has_res=residual is not None, activation=activation)
    grid = (pl.cdiv(M, tm), pl.cdiv(N, tn), K // tk)
    return pl.pallas_call(
        kernel,
        out_shape=jax.ShapeDtypeStruct((M, N), out_dtype),
        grid_spec=pltpu.PrefetchScalarGridSpec(
            num_scalar_prefetch=0,
            grid=grid,
            in_specs=in_specs,
            out_specs=pl.BlockSpec((tm, tn), lambda i, j, k: (i, j)),
            scratch_shapes=[pltpu.VMEM((tm, tn), jnp.float32)],
        ),
        compiler_params=pltpu.CompilerParams(
            dimension_semantics=("parallel", "parallel", "arbitrary"),
            vmem_limit_bytes=_VMEM_LIMIT,
        ),
    )(*operands)


# ----------------------------------------------------------------------------
# Causal self-attention over the fused (B*T, 3C) qkv buffer.
# One batch per grid step; all heads handled inside the kernel with static
# column slices; merged-head (T, C) lane-dense output block.
# ----------------------------------------------------------------------------
def _fused_causal_attn_kernel(qkv_ref, o_ref, *, n_head, scale):
    t, c3 = qkv_ref.shape
    c = c3 // 3
    hd = c // n_head
    row = jax.lax.broadcasted_iota(jnp.int32, (t, t), 0)
    col = jax.lax.broadcasted_iota(jnp.int32, (t, t), 1)
    causal = col <= row
    for h in range(n_head):
        q = qkv_ref[:, h * hd:(h + 1) * hd]
        k = qkv_ref[:, c + h * hd:c + (h + 1) * hd]
        v = qkv_ref[:, 2 * c + h * hd:2 * c + (h + 1) * hd]
        # NT dot_general: contract last dims, no materialized k transpose.
        s = jax.lax.dot_general(q, k, (((1,), (1,)), ((), ())),
                                preferred_element_type=jnp.float32) * scale
        s = jnp.where(causal, s, -1e30)
        m = jnp.max(s, axis=-1, keepdims=True)
        p = jnp.exp(s - m)
        denom = jnp.sum(p, axis=-1, keepdims=True)
        o = jnp.dot(p.astype(qkv_ref.dtype), v, preferred_element_type=jnp.float32)
        o = o * pl.reciprocal(denom, approx=True)
        o_ref[:, h * hd:(h + 1) * hd] = o.astype(o_ref.dtype)


def causal_attention(qkv, *, batch, seq, n_head):
    # TODO(synk): full (T, T) score tile per head; switch to a flash-style KV
    # block loop with causal block skipping if block_size grows past ~512.
    rows, c3 = qkv.shape
    c = c3 // 3
    hd = c // n_head
    kernel = functools.partial(_fused_causal_attn_kernel, n_head=n_head,
                               scale=1.0 / math.sqrt(hd))
    return pl.pallas_call(
        kernel,
        out_shape=jax.ShapeDtypeStruct((rows, c), qkv.dtype),
        grid_spec=pltpu.PrefetchScalarGridSpec(
            num_scalar_prefetch=0,
            grid=(batch,),
            in_specs=[pl.BlockSpec((seq, c3), lambda b: (b, 0))],
            out_specs=pl.BlockSpec((seq, c), lambda b: (b, 0)),
        ),
        compiler_params=pltpu.CompilerParams(
            dimension_semantics=("parallel",),
            vmem_limit_bytes=_VMEM_LIMIT,
        ),
    )(qkv)


# ----------------------------------------------------------------------------
# GPT forward (dropout=0 in the spec -> identity, omitted)
# ----------------------------------------------------------------------------
def init_params(key, *, vocab_size, block_size, n_embd, n_head, n_layer,
                dtype=jnp.float32):
    keys = jax.random.split(key, 5 + n_layer)

    def norm(k, shape, scale=0.02):
        return (scale * jax.random.normal(k, shape)).astype(dtype)

    def ln_w(k, shape):
        return (1.0 + 0.05 * jax.random.normal(k, shape)).astype(dtype)

    params = {
        "wte": norm(keys[0], (vocab_size, n_embd)),
        "wpe": norm(keys[1], (block_size, n_embd)),
        "lnf_w": ln_w(keys[2], (n_embd,)),
        "w_head": norm(keys[3], (n_embd, vocab_size)),
        "b_head": norm(keys[4], (vocab_size,)),
        "blocks": [],
    }
    for li in range(n_layer):
        bk = jax.random.split(keys[5 + li], 7)
        params["blocks"].append({
            "ln1_w": ln_w(bk[0], (n_embd,)),
            "ln2_w": ln_w(bk[1], (n_embd,)),
            "w_qkv": norm(bk[2], (n_embd, 3 * n_embd)),     # [q | k | v], per head
            "w_proj": norm(bk[3], (n_embd, n_embd)),
            "b_proj": norm(bk[4], (n_embd,)),
            "w_fc1": norm(bk[5], (n_embd, 4 * n_embd)),
            "w_fc2": norm(bk[6], (4 * n_embd, n_embd)),
        })
    return params


def gpt_forward(params, idx, targets=None, *, n_head):
    wte, wpe = params["wte"], params["wpe"]
    B, T = idx.shape
    C = wte.shape[-1]

    # TODO(synk): embedding gather kept as plain JAX (no clean Pallas win here).
    x = (jnp.take(wte, idx, axis=0) + wpe[:T]).reshape(B * T, C).astype(jnp.float32)

    for blk in params["blocks"]:
        # --- multi-head self-attention (pre-LN) ---
        h = layer_norm(x, blk["ln1_w"])                              # bf16
        qkv = matmul(h, blk["w_qkv"])                                # (B*T, 3C) bf16
        o = causal_attention(qkv, batch=B, seq=T, n_head=n_head)    # (B*T, C) bf16
        # attn projection with bias; residual add fused into the epilogue
        x = matmul(o, blk["w_proj"], bias=blk["b_proj"], residual=x,
                   out_dtype=jnp.float32)

        # --- feed-forward (GELU fused into the fc1 epilogue) ---
        h = layer_norm(x, blk["ln2_w"])
        f = matmul(h, blk["w_fc1"], activation="gelu")               # (B*T, 4C) bf16
        x = matmul(f, blk["w_fc2"], residual=x, out_dtype=jnp.float32)

    h = layer_norm(x, params["lnf_w"])                               # ln_f
    logits = matmul(h, params["w_head"], bias=params["b_head"],
                    out_dtype=jnp.float32).reshape(B, T, -1)

    if targets is None:
        return logits, None
    # TODO(synk): cross-entropy loss kept as plain JAX (tiny, not kernel-worthy).
    V = logits.shape[-1]
    logp = jax.nn.log_softmax(logits.reshape(-1, V), axis=-1)
    loss = -jnp.mean(jnp.take_along_axis(logp, targets.reshape(-1, 1), axis=-1))
    return logits, loss


# ----------------------------------------------------------------------------
# Pure-JAX reference with matching mixed precision (bf16 GEMMs, f32 residual)
# ----------------------------------------------------------------------------
def ref_forward(params, idx, *, n_head):
    f32, bf16 = jnp.float32, jnp.bfloat16
    wte, wpe = params["wte"], params["wpe"]
    B, T = idx.shape
    C = wte.shape[-1]
    hd = C // n_head
    x = (wte[idx] + wpe[:T]).astype(f32)

    def ln(z, w):
        m = jnp.mean(z, -1, keepdims=True)
        v = jnp.mean((z - m) ** 2, -1, keepdims=True)
        return ((z - m) * jax.lax.rsqrt(v + EPS) * w).astype(bf16)

    def mm(a, b, bias=None):
        out = jnp.dot(a.astype(bf16), b.astype(bf16), preferred_element_type=f32)
        if bias is not None:
            out = out + bias.astype(f32)
        return out

    mask = jnp.tril(jnp.ones((T, T), dtype=bool))
    for blk in params["blocks"]:
        h = ln(x, blk["ln1_w"])
        qkv = mm(h, blk["w_qkv"]).astype(bf16)
        q, k, v = jnp.split(qkv, 3, axis=-1)

        def sp(z):
            return z.reshape(B, T, n_head, hd).transpose(0, 2, 1, 3)

        q, k, v = sp(q), sp(k), sp(v)
        s = jnp.einsum("bhqd,bhkd->bhqk", q, k,
                       preferred_element_type=f32) / math.sqrt(hd)
        s = jnp.where(mask, s, -1e30)
        p = jax.nn.softmax(s, axis=-1)
        o = jnp.einsum("bhqk,bhkd->bhqd", p.astype(bf16), v,
                       preferred_element_type=f32)
        o = o.transpose(0, 2, 1, 3).reshape(B, T, C).astype(bf16)
        x = x + mm(o, blk["w_proj"], blk["b_proj"])
        h2 = ln(x, blk["ln2_w"])
        f = jax.nn.gelu(mm(h2, blk["w_fc1"]), approximate=True).astype(bf16)
        x = x + mm(f, blk["w_fc2"])
    h = ln(x, params["lnf_w"])
    return mm(h, params["w_head"], params["b_head"])


if __name__ == "__main__":
    key = jax.random.PRNGKey(0)
    # Small config consistent with the module (n_embd divisible by n_head=6);
    # n_embd=768 gives head_size=128 so head slices are lane-aligned.
    cfg = dict(vocab_size=256, block_size=32, n_embd=768, n_head=6, n_layer=2)
    B, T = 2, 16

    pkey, ikey = jax.random.split(key)
    params = init_params(pkey, dtype=jnp.float32, **cfg)
    idx = jax.random.randint(ikey, (B, T), 0, cfg["vocab_size"])

    logits, loss = gpt_forward(params, idx, n_head=cfg["n_head"])
    logits = jax.block_until_ready(logits)

    ref = ref_forward(params, idx, n_head=cfg["n_head"])
    max_err = float(jnp.max(jnp.abs(logits - ref)))
    assert jnp.allclose(logits, ref, atol=3e-2, rtol=2e-2), \
        f"mismatch vs reference: max abs err {max_err}"

    print("KERNEL_OK")
</pallas_src>

<mosaic_0001>
module attributes {stable_mosaic.version = 11 : i64} {
  func.func @_ln_kernel(%arg0: i32, %arg1: memref<32x768xf32, #tpu.memory_space<vmem>>, %arg2: memref<1x768xf32, #tpu.memory_space<vmem>>, %arg3: memref<32x768xbf16, #tpu.memory_space<vmem>>) attributes {dimension_semantics = [#tpu.dimension_semantics<parallel>], iteration_bounds = array<i64: 1>, scalar_prefetch = 0 : i64, scratch_operands = 0 : i64, tpu.core_type = #tpu.core_type<tc>, window_params = [{transform_indices = @transform_0, window_bounds = array<i64: 32, 768>}, {pipeline_mode = #tpu.pipeline_mode<synchronous>, transform_indices = @transform_1, window_bounds = array<i64: 1, 768>}, {transform_indices = @transform_2, window_bounds = array<i64: 32, 768>}]} {
    %c0 = arith.constant 0 : index
    %c0_0 = arith.constant 0 : index
    %0 = vector.load %arg1[%c0, %c0_0] : memref<32x768xf32, #tpu.memory_space<vmem>>, vector<32x768xf32>
    %c0_1 = arith.constant 0 : index
    %c0_2 = arith.constant 0 : index
    %1 = vector.load %arg2[%c0_1, %c0_2] : memref<1x768xf32, #tpu.memory_space<vmem>>, vector<1x768xf32>
    %cst = arith.constant dense<0.000000e+00> : vector<32xf32>
    %2 = vector.multi_reduction <add>, %0, %cst [1] : vector<32x768xf32> to vector<32xf32>
    %3 = vector.shape_cast %2 : vector<32xf32> to vector<32x1xf32>
    %cst_3 = arith.constant 0.00130208337 : f32
    %4 = vector.broadcast %cst_3 : f32 to vector<32x1xf32>
    %5 = arith.mulf %3, %4 : vector<32x1xf32>
    %6 = vector.broadcast %5 : vector<32x1xf32> to vector<32x768xf32>
    %7 = arith.subf %0, %6 : vector<32x768xf32>
    %8 = arith.mulf %7, %7 : vector<32x768xf32>
    %cst_4 = arith.constant dense<0.000000e+00> : vector<32xf32>
    %9 = vector.multi_reduction <add>, %8, %cst_4 [1] : vector<32x768xf32> to vector<32xf32>
    %10 = vector.shape_cast %9 : vector<32xf32> to vector<32x1xf32>
    %cst_5 = arith.constant 0.00130208337 : f32
    %11 = vector.broadcast %cst_5 : f32 to vector<32x1xf32>
    %12 = arith.mulf %10, %11 : vector<32x1xf32>
    %cst_6 = arith.constant 9.99999974E-6 : f32
    %13 = vector.broadcast %cst_6 : f32 to vector<32x1xf32>
    %14 = arith.addf %12, %13 : vector<32x1xf32>
    %15 = math.rsqrt %14 : vector<32x1xf32>
    %16 = vector.broadcast %15 : vector<32x1xf32> to vector<32x768xf32>
    %17 = arith.mulf %7, %16 : vector<32x768xf32>
    %18 = vector.broadcast %1 : vector<1x768xf32> to vector<32x768xf32>
    %19 = arith.mulf %17, %18 : vector<32x768xf32>
    %20 = arith.truncf %19 : vector<32x768xf32> to vector<32x768xbf16>
    %c0_7 = arith.constant 0 : index
    %c0_8 = arith.constant 0 : index
    %21 = vector.load %arg3[%c0_7, %c0_8] : memref<32x768xbf16, #tpu.memory_space<vmem>>, vector<32x768xbf16>
    tpu.vector_store %arg3[%c0_7, %c0_8], %20 {strides = array<i32>} : memref<32x768xbf16, #tpu.memory_space<vmem>>, vector<32x768xbf16>,
    return
  }
  func.func @transform_0(%arg0: i32) -> (i32, i32) {
    %c0_i32 = arith.constant 0 : i32
    %c0_i32_0 = arith.constant 0 : i32
    return %arg0, %c0_i32 : i32, i32
  }
  func.func @transform_1(%arg0: i32) -> (i32, i32) {
    %c0_i32 = arith.constant 0 : i32
    %c0_i32_0 = arith.constant 0 : i32
    %c0_i32_1 = arith.constant 0 : i32
    return %c0_i32, %c0_i32_0 : i32, i32
  }
  func.func @transform_2(%arg0: i32) -> (i32, i32) {
    %c0_i32 = arith.constant 0 : i32
    %c0_i32_0 = arith.constant 0 : i32
    return %arg0, %c0_i32 : i32, i32
  }
}

</mosaic_0001>

<llo_original>
// kernel: tpu_custom_call.1
$region0: #{tpu_custom_call.1}
  #allocation0 [shape = 'u32[]', space=smem, size = 0x4, offset = 0x4, fixed_abs, tag = 'smem constant byte address 0x4 - core index']
  #allocation1 [shape = 'u32[144,128]{1,0:T(1,128)}', space=vmem, size = 0x12000, scoped, tag = 'internal scratch']
  %s0 = inlined_call_operand.hbm [shape: f32[32,768], index: 0, kind: input, shape index: {}]
  %s1 = inlined_call_operand.hbm [shape: f32[1,768], index: 1, kind: input, shape index: {}]
  %s2 = inlined_call_operand.hbm [shape: bf16[32,768], index: 2, kind: output, shape index: {}]
  %s3 = sld [smem:[#allocation0]]
  $region26: #{tpu_custom_call.1} parent=0
    _
  %s5 = ssub.s32 1, %s3
  %s6 = scalar_select 0, %s5, %s3
  $region1: #{tpu_custom_call.1} parent=0
    #allocation2 [shape = 'u8[98304]{0}', space=vmem, size = 0x18000, scoped, tag = 'input window, operand 0, single buffered']
    #allocation3 [shape = 's32[1]{0}', space=sflag, size = 0x4, scoped, tag = 'scoped memory for tpu_custom_call.1']
    #allocation4 [shape = 's32[1]{0}', space=sflag, size = 0x4, scoped, tag = 'scoped memory for tpu_custom_call.1']
    #allocation5 [shape = 'u8[3072]{0}', space=vmem, size = 0xc00, scoped, tag = 'input window, operand 1, single buffered']
    #allocation6 [shape = 's32[1]{0}', space=sflag, size = 0x4, scoped, tag = 'scoped memory for tpu_custom_call.1']
    #allocation7 [shape = 'u8[49152]{0}', space=vmem, size = 0xc000, scoped, tag = 'output window, operand 0, single buffered']
    %7 = vsyncpa [#allocation3], 0
    %8 = vsyncpa [#allocation6], 0
    %9 = vsyncpa [#allocation4], 0
    // Predicated region
    $region2: #{tpu_custom_call.1} parent=1 // pred_check
      _
    $region3: #{tpu_custom_call.1} parent=1 // pred_check_branch
      %11 = sbr.rel (0) target = $region5
    $region4: #{tpu_custom_call.1} parent=1 // pred_region
      %s13 = ssub.s32 3072, 3072
      %14 = vsyncadd [#allocation3], %s13
      %s15 = sshll.u32 [#allocation2], 4
      %s16 = int_to_ptr.vmem [resolvable:$true] %s15
      %21 = dma.hbm_to_vmem [thread:$0]  %s0, 3072, %s16, [#allocation3], 768, 768, 48
    $region5: #{tpu_custom_call.1} parent=1 // pred_fallthru
      _
    // Predicated region
    $region6: #{tpu_custom_call.1} parent=1 // pred_check
      _
    $region7: #{tpu_custom_call.1} parent=1 // pred_check_branch
      %23 = sbr.rel (0) target = $region9
    $region8: #{tpu_custom_call.1} parent=1 // pred_region
      %s25 = ssub.s32 96, 96
      %26 = vsyncadd [#allocation6], %s25
      %s28 = sshll.u32 [#allocation5], 4
      %s29 = int_to_ptr.vmem [resolvable:$true] %s28
      %31 = dma.hbm_to_vmem [thread:$0]  %s1, 96, %s29, [#allocation6]
    $region9: #{tpu_custom_call.1} parent=1 // pred_fallthru
      _
    // Predicated region
    $region10: #{tpu_custom_call.1} parent=1 // pred_check
      _
    $region11: #{tpu_custom_call.1} parent=1 // pred_check_branch
      %33 = sbr.rel (0) target = $region13
    $region12: #{tpu_custom_call.1} parent=1 // pred_region
      %34 = dma.done [#allocation3], 3072
    $region13: #{tpu_custom_call.1} parent=1 // pred_fallthru
      _
    // Predicated region
    $region14: #{tpu_custom_call.1} parent=1 // pred_check
      _
    $region15: #{tpu_custom_call.1} parent=1 // pred_check_branch
      %36 = sbr.rel (0) target = $region17
    $region16: #{tpu_custom_call.1} parent=1 // pred_region
      %37 = dma.done [#allocation6], 96
    $region17: #{tpu_custom_call.1} parent=1 // pred_fallthru
      _
    %v38 = vld [vmem:[#allocation2] sm:$0xff]
    %v39 = vld [vmem:[#allocation2 + $0x8] sm:$0xff]
    %v40 = vld [vmem:[#allocation2 + $0x10] sm:$0xff]
    %v41 = vld [vmem:[#allocation2 + $0x18] sm:$0xff]
    %v42 = vld [vmem:[#allocation2 + $0x20] sm:$0xff]
    %v43 = vld [vmem:[#allocation2 + $0x28] sm:$0xff]
    %v44 = vld [vmem:[#allocation2 + $0x30] sm:$0xff]
    %v45 = vld [vmem:[#allocation2 + $0x38] sm:$0xff]
    %v46 = vld [vmem:[#allocation2 + $0x40] sm:$0xff]
    %v47 = vld [vmem:[#allocation2 + $0x48] sm:$0xff]
    %v48 = vld [vmem:[#allocation2 + $0x50] sm:$0xff]
    %v49 = vld [vmem:[#allocation2 + $0x58] sm:$0xff]
    %v50 = vld [vmem:[#allocation2 + $0x60] sm:$0xff]
    %v51 = vld [vmem:[#allocation2 + $0x68] sm:$0xff]
    %v52 = vld [vmem:[#allocation2 + $0x70] sm:$0xff]
    %v53 = vld [vmem:[#allocation2 + $0x78] sm:$0xff]
    %v54 = vld [vmem:[#allocation2 + $0x80] sm:$0xff]
    %v55 = vld [vmem:[#allocation2 + $0x88] sm:$0xff]
    %v56 = vld [vmem:[#allocation2 + $0x90] sm:$0xff]
    %v57 = vld [vmem:[#allocation2 + $0x98] sm:$0xff]
    %v58 = vld [vmem:[#allocation2 + $0xa0] sm:$0xff]
    %v59 = vld [vmem:[#allocation2 + $0xa8] sm:$0xff]
    %v60 = vld [vmem:[#allocation2 + $0xb0] sm:$0xff]
    %v61 = vld [vmem:[#allocation2 + $0xb8] sm:$0xff]
    %v62 = vld [vmem:[#allocation5] sm:$0x3f]
    %v63 = vadd.f32 %v38, %v39
    %v64 = vadd.f32 %v63, %v40
    %v65 = vadd.f32 %v64, %v41
    %v66 = vadd.f32 %v65, %v42
    %v67 = vadd.f32 %v66, %v43
    %68 = vadd.xlane.f32.xlu0 %v67
    %v69 = vpop.xlane.xlu0 %68
    %v70 = vadd.f32 %v44, %v45
    %v71 = vadd.f32 %v70, %v46
    %v72 = vadd.f32 %v71, %v47
    %v73 = vadd.f32 %v72, %v48
    %v74 = vadd.f32 %v73, %v49
    %75 = vadd.xlane.f32.xlu0 %v74
    %v76 = vpop.xlane.xlu0 %75
    %v77 = vadd.f32 %v50, %v51
    %v78 = vadd.f32 %v77, %v52
    %v79 = vadd.f32 %v78, %v53
    %v80 = vadd.f32 %v79, %v54
    %v81 = vadd.f32 %v80, %v55
    %82 = vadd.xlane.f32.xlu0 %v81
    %v83 = vpop.xlane.xlu0 %82
    %v84 = vadd.f32 %v56, %v57
    %v85 = vadd.f32 %v84, %v58
    %v86 = vadd.f32 %v85, %v59
    %v87 = vadd.f32 %v86, %v60
    %v88 = vadd.f32 %v87, %v61
    %89 = vadd.xlane.f32.xlu0 %v88
    %v90 = vpop.xlane.xlu0 %89
    %v91 = vmul.f32 %v69, 0.0013020834
    %v92 = vmul.f32 %v76, 0.0013020834
    %v93 = vmul.f32 %v83, 0.0013020834
    %v94 = vmul.f32 %v90, 0.0013020834
    %v95 = vsub.f32 %v38, %v91
    %v96 = vsub.f32 %v39, %v91
    %v97 = vsub.f32 %v40, %v91
    %v98 = vsub.f32 %v41, %v91
    %v99 = vsub.f32 %v42, %v91
    %v100 = vsub.f32 %v43, %v91
    %v101 = vsub.f32 %v44, %v92
    %v102 = vsub.f32 %v45, %v92
    %v103 = vsub.f32 %v46, %v92
    %v104 = vsub.f32 %v47, %v92
    %v105 = vsub.f32 %v48, %v92
    %v106 = vsub.f32 %v49, %v92
    %v107 = vsub.f32 %v50, %v93
    %v108 = vsub.f32 %v51, %v93
    %v109 = vsub.f32 %v52, %v93
    %v110 = vsub.f32 %v53, %v93
    %v111 = vsub.f32 %v54, %v93
    %v112 = vsub.f32 %v55, %v93
    %v113 = vsub.f32 %v56, %v94
    %v114 = vsub.f32 %v57, %v94
    %v115 = vsub.f32 %v58, %v94
    %v116 = vsub.f32 %v59, %v94
    %v117 = vsub.f32 %v60, %v94
    %v118 = vsub.f32 %v61, %v94
    %v119 = vmul.f32 %v95, %v95
    %v120 = vmul.f32 %v96, %v96
    %v121 = vmul.f32 %v97, %v97
    %v122 = vmul.f32 %v98, %v98
    %v123 = vmul.f32 %v99, %v99
    %v124 = vmul.f32 %v100, %v100
    %v125 = vmul.f32 %v101, %v101
    %v126 = vmul.f32 %v102, %v102
    %v127 = vmul.f32 %v103, %v103
    %v128 = vmul.f32 %v104, %v104
    %v129 = vmul.f32 %v105, %v105
    %v130 = vmul.f32 %v106, %v106
    %v131 = vmul.f32 %v107, %v107
    %v132 = vmul.f32 %v108, %v108
    %v133 = vmul.f32 %v109, %v109
    %v134 = vmul.f32 %v110, %v110
    %v135 = vmul.f32 %v111, %v111
    %v136 = vmul.f32 %v112, %v112
    %v137 = vmul.f32 %v113, %v113
    %v138 = vmul.f32 %v114, %v114
    %v139 = vmul.f32 %v115, %v115
    %v140 = vmul.f32 %v116, %v116
    %v141 = vmul.f32 %v117, %v117
    %v142 = vmul.f32 %v118, %v118
    %v143 = vadd.f32 %v119, %v120
    %v144 = vadd.f32 %v143, %v121
    %v145 = vadd.f32 %v144, %v122
    %v146 = vadd.f32 %v145, %v123
    %v147 = vadd.f32 %v146, %v124
    %148 = vadd.xlane.f32.xlu0 %v147
    %v149 = vpop.xlane.xlu0 %148
    %v150 = vadd.f32 %v125, %v126
    %v151 = vadd.f32 %v150, %v127
    %v152 = vadd.f32 %v151, %v128
    %v153 = vadd.f32 %v152, %v129
    %v154 = vadd.f32 %v153, %v130
    %155 = vadd.xlane.f32.xlu0 %v154
    %v156 = vpop.xlane.xlu0 %155
    %v157 = vadd.f32 %v131, %v132
    %v158 = vadd.f32 %v157, %v133
    %v159 = vadd.f32 %v158, %v134
    %v160 = vadd.f32 %v159, %v135
    %v161 = vadd.f32 %v160, %v136
    %162 = vadd.xlane.f32.xlu0 %v161
    %v163 = vpop.xlane.xlu0 %162
    %v164 = vadd.f32 %v137, %v138
    %v165 = vadd.f32 %v164, %v139
    %v166 = vadd.f32 %v165, %v140
    %v167 = vadd.f32 %v166, %v141
    %v168 = vadd.f32 %v167, %v142
    %169 = vadd.xlane.f32.xlu0 %v168
    %v170 = vpop.xlane.xlu0 %169
    %v171 = vmul.f32 %v149, 0.0013020834
    %v172 = vmul.f32 %v156, 0.0013020834
    %v173 = vmul.f32 %v163, 0.0013020834
    %v174 = vmul.f32 %v170, 0.0013020834
    %v175 = vadd.f32 %v171, 1e-05
    %v176 = vadd.f32 %v172, 1e-05
    %v177 = vadd.f32 %v173, 1e-05
    %v178 = vadd.f32 %v174, 1e-05
    %v179 = vrsqrt.pop %v175
    %v180 = vrsqrt.pop %v176
    %v181 = vrsqrt.pop %v177
    %v182 = vrsqrt.pop %v178
    %v183 = vmul.f32 %v95, %v179
    %v184 = vmul.f32 %v96, %v179
    %v185 = vmul.f32 %v97, %v179
    %v186 = vmul.f32 %v98, %v179
    %v187 = vmul.f32 %v99, %v179
    %v188 = vmul.f32 %v100, %v179
    %v189 = vmul.f32 %v101, %v180
    %v190 = vmul.f32 %v102, %v180
    %v191 = vmul.f32 %v103, %v180
    %v192 = vmul.f32 %v104, %v180
    %v193 = vmul.f32 %v105, %v180
    %v194 = vmul.f32 %v106, %v180
    %v195 = vmul.f32 %v107, %v181
    %v196 = vmul.f32 %v108, %v181
    %v197 = vmul.f32 %v109, %v181
    %v198 = vmul.f32 %v110, %v181
    %v199 = vmul.f32 %v111, %v181
    %v200 = vmul.f32 %v112, %v181
    %v201 = vmul.f32 %v113, %v182
    %v202 = vmul.f32 %v114, %v182
    %v203 = vmul.f32 %v115, %v182
    %v204 = vmul.f32 %v116, %v182
    %v205 = vmul.f32 %v117, %v182
    %v206 = vmul.f32 %v118, %v182
    %v208 = vlaneseq
    %v209 = vshrl.u32 %v208, 7
    %v210 = vsub.s32 0, %v209
    %v211 = vrot.slane %v62, %v210
    %v212 = vlaneseq
    %v213 = vshrl.u32 %v212, 7
    %v214 = vsub.s32 1, %v213
    %v215 = vrot.slane %v62, %v214
    %v216 = vlaneseq
    %v217 = vshrl.u32 %v216, 7
    %v218 = vsub.s32 2, %v217
    %v219 = vrot.slane %v62, %v218
    %v220 = vlaneseq
    %v221 = vshrl.u32 %v220, 7
    %v222 = vsub.s32 3, %v221
    %v223 = vrot.slane %v62, %v222
    %v224 = vlaneseq
    %v225 = vshrl.u32 %v224, 7
    %v226 = vsub.s32 4, %v225
    %v227 = vrot.slane %v62, %v226
    %v228 = vlaneseq
    %v229 = vshrl.u32 %v228, 7
    %v230 = vsub.s32 5, %v229
    %v231 = vrot.slane %v62, %v230
    %v238 = vmul.f32 %v183, %v211
    %v239 = vmul.f32 %v184, %v215
    %v240 = vmul.f32 %v185, %v219
    %v241 = vmul.f32 %v186, %v223
    %v242 = vmul.f32 %v187, %v227
    %v243 = vmul.f32 %v188, %v231
    %v244 = vmul.f32 %v189, %v211
    %v245 = vmul.f32 %v190, %v215
    %v246 = vmul.f32 %v191, %v219
    %v247 = vmul.f32 %v192, %v223
    %v248 = vmul.f32 %v193, %v227
    %v249 = vmul.f32 %v194, %v231
    %v250 = vmul.f32 %v195, %v211
    %v251 = vmul.f32 %v196, %v215
    %v252 = vmul.f32 %v197, %v219
    %v253 = vmul.f32 %v198, %v223
    %v254 = vmul.f32 %v199, %v227
    %v255 = vmul.f32 %v200, %v231
    %v256 = vmul.f32 %v201, %v211
    %v257 = vmul.f32 %v202, %v215
    %v258 = vmul.f32 %v203, %v219
    %v259 = vmul.f32 %v204, %v223
    %v260 = vmul.f32 %v205, %v227
    %v261 = vmul.f32 %v206, %v231
    %v262 = vpack.c.bf16 %v244, %v238
    %v263 = vpack.c.bf16 %v245, %v239
    %v264 = vpack.c.bf16 %v246, %v240
    %v265 = vpack.c.bf16 %v247, %v241
    %v266 = vpack.c.bf16 %v248, %v242
    %v267 = vpack.c.bf16 %v249, %v243
    %v268 = vpack.c.bf16 %v256, %v250
    %v269 = vpack.c.bf16 %v257, %v251
    %v270 = vpack.c.bf16 %v258, %v252
    %v271 = vpack.c.bf16 %v259, %v253
    %v272 = vpack.c.bf16 %v260, %v254
    %v273 = vpack.c.bf16 %v261, %v255
    %v286 = vunpack.c.l.b16 %v262
    %v287 = vunpack.c.l.b16 %v263
    %v288 = vunpack.c.l.b16 %v264
    %v289 = vunpack.c.l.b16 %v265
    %v290 = vunpack.c.l.b16 %v266
    %v291 = vunpack.c.l.b16 %v267
    %v292 = vunpack.c.h.b16 %v262
    %v293 = vunpack.c.h.b16 %v263
    %v294 = vunpack.c.h.b16 %v264
    %v295 = vunpack.c.h.b16 %v265
    %v296 = vunpack.c.h.b16 %v266
    %v297 = vunpack.c.h.b16 %v267
    %v298 = vunpack.c.l.b16 %v268
    %v299 = vunpack.c.l.b16 %v269
    %v300 = vunpack.c.l.b16 %v270
    %v301 = vunpack.c.l.b16 %v271
    %v302 = vunpack.c.l.b16 %v272
    %v303 = vunpack.c.l.b16 %v273
    %v304 = vunpack.c.h.b16 %v268
    %v305 = vunpack.c.h.b16 %v269
    %v306 = vunpack.c.h.b16 %v270
    %v307 = vunpack.c.h.b16 %v271
    %v308 = vunpack.c.h.b16 %v272
    %v309 = vunpack.c.h.b16 %v273
    %v310 = vpack.c.b16 %v287, %v286
    %v311 = vpack.c.b16 %v289, %v288
    %v312 = vpack.c.b16 %v291, %v290
    %v313 = vpack.c.b16 %v293, %v292
    %v314 = vpack.c.b16 %v295, %v294
    %v315 = vpack.c.b16 %v297, %v296
    %v316 = vpack.c.b16 %v299, %v298
    %v317 = vpack.c.b16 %v301, %v300
    %v318 = vpack.c.b16 %v303, %v302
    %v319 = vpack.c.b16 %v305, %v304
    %v320 = vpack.c.b16 %v307, %v306
    %v321 = vpack.c.b16 %v309, %v308
    %334 = vst [vmem:[#allocation7] sm:$0xff] %v310
    %335 = vst [vmem:[#allocation7 + $0x8] sm:$0xff] %v311
    %336 = vst [vmem:[#allocation7 + $0x10] sm:$0xff] %v312
    %337 = vst [vmem:[#allocation7 + $0x18] sm:$0xff] %v313
    %338 = vst [vmem:[#allocation7 + $0x20] sm:$0xff] %v314
    %339 = vst [vmem:[#allocation7 + $0x28] sm:$0xff] %v315
    %340 = vst [vmem:[#allocation7 + $0x30] sm:$0xff] %v316
    %341 = vst [vmem:[#allocation7 + $0x38] sm:$0xff] %v317
    %342 = vst [vmem:[#allocation7 + $0x40] sm:$0xff] %v318
    %343 = vst [vmem:[#allocation7 + $0x48] sm:$0xff] %v319
    %344 = vst [vmem:[#allocation7 + $0x50] sm:$0xff] %v320
    %345 = vst [vmem:[#allocation7 + $0x58] sm:$0xff] %v321
    // Predicated region
    $region18: #{tpu_custom_call.1} parent=1 // pred_check
      _
    $region19: #{tpu_custom_call.1} parent=1 // pred_check_branch
      %347 = sbr.rel (0) target = $region21
    $region20: #{tpu_custom_call.1} parent=1 // pred_region
      %s349 = ssub.s32 1536, 1536
      %350 = vsyncadd [#allocation4], %s349
      %s351 = sshll.u32 [#allocation7], 4
      %s352 = int_to_ptr.vmem [resolvable:$true] %s351
      %357 = dma.vmem_to_hbm [thread:$0]  %s352, 1536, %s2, [#allocation4], 384, 384, 24
    $region21: #{tpu_custom_call.1} parent=1 // pred_fallthru
      _
    // Predicated region
    $region22: #{tpu_custom_call.1} parent=1 // pred_check
      _
    $region23: #{tpu_custom_call.1} parent=1 // pred_check_branch
      %359 = sbr.rel (0) target = $region25
    $region24: #{tpu_custom_call.1} parent=1 // pred_region
      %360 = dma.done [#allocation4], 1536
    $region25: #{tpu_custom_call.1} parent=1 // pred_fallthru
      _
    %361 = vsyncpa [#allocation3], 1
    %362 = vsyncpa [#allocation6], 1
    %363 = vsyncpa [#allocation4], 1

</llo_original>
